<compile_context>
chip_gen: v6e
topology: v6e:2x2x1
jax: 0.10.0
libtpu: 0.0.40
codegen_flags: <defaults>
</compile_context>

<pallas_src>
import functools

import jax
import jax.numpy as jnp
from jax.experimental import pallas as pl
from jax.experimental.pallas import tpu as pltpu

_LANE = 128
_SUBLANE_BF16 = 16  # bf16 packs 16 rows per vreg sublane group


def _round_up(n, m):
    return ((n + m - 1) // m) * m


def _pad_axis(a, axis, target):
    pad = target - a.shape[axis]
    if pad == 0:
        return a
    widths = [(0, 0)] * a.ndim
    widths[axis] = (0, pad)
    return jnp.pad(a, widths)


def _pad2(a, rows, cols):
    return _pad_axis(_pad_axis(a, 0, rows), 1, cols)


def _tpu_generation_info():
    """Best-effort (vmem_capacity_bytes, tensorcores_per_chip)."""
    kind = ""
    try:
        kind = jax.devices()[0].device_kind.lower()
    except Exception:
        pass
    is_v7 = "v7" in kind
    vmem_cap = None
    try:
        vmem_cap = int(getattr(pltpu.get_tpu_info(), "vmem_capacity_bytes", 0)) or None
    except Exception:
        pass
    if vmem_cap is None:
        # Unknown chip -> assume the smallest VMEM (v7x: 64 MiB/TC); known v5e/v6e -> 128 MiB.
        vmem_cap = (64 << 20) if (is_v7 or not kind) else (128 << 20)
    num_tc = 2 if is_v7 else 1
    return vmem_cap, num_tc


def _vmem_limit_bytes(vmem_cap):
    # 16 MiB headroom for compiler-internal scratch, hard cap at 112 MiB.
    return max(32 << 20, min(vmem_cap - (16 << 20), 112 << 20))


def _pick_batch_tile(batch, num_tc):
    """MXU-friendly batch tile; the caller zero-pads B up to a multiple of it."""
    min_grid = max(1, num_tc)  # want >= num_tc grid steps when B allows (v7x megacore)
    candidates = [t for t in (512, 256, 128) if batch >= t * min_grid]
    if candidates:
        # Minimize zero-padding; break ties toward the larger tile (fewer grid steps).
        return min(candidates, key=lambda t: (_round_up(batch, t), -t))
    if num_tc >= 2 and batch >= 2 * _SUBLANE_BF16:
        # Small batch on a 2-TC chip: split into two >=16-row tiles so both cores work.
        return _round_up((batch + 1) // 2, _SUBLANE_BF16)
    return _round_up(max(batch, _SUBLANE_BF16), _SUBLANE_BF16)


def _dqn_kernel(x_ref, w1_ref, b1_ref, w2_ref, b2_ref, w3_ref, b3_ref,
                w4_ref, b4_ref, o_ref):
    # Four fused layers on the current batch tile. Matmuls run on the MXU in bf16
    # with f32 accumulation; bias-add / ReLU stay in f32 on the VPU.
    h = jnp.dot(x_ref[...], w1_ref[...], preferred_element_type=jnp.float32)
    h = jnp.maximum(h + b1_ref[...], 0.0).astype(jnp.bfloat16)
    h = jnp.dot(h, w2_ref[...], preferred_element_type=jnp.float32)
    h = jnp.maximum(h + b2_ref[...], 0.0).astype(jnp.bfloat16)
    h = jnp.dot(h, w3_ref[...], preferred_element_type=jnp.float32)
    h = jnp.maximum(h + b3_ref[...], 0.0).astype(jnp.bfloat16)
    out = jnp.dot(h, w4_ref[...], preferred_element_type=jnp.float32) + b4_ref[...]
    o_ref[...] = out.astype(o_ref.dtype)


def prepare_dqn_per_params(params):
    """Pad feature dims to lane width and cast weights to bf16 ONCE (hoisted out of
    the per-call forward). Weights stored [in, out]; biases [1, out].

    Returns (prepared_dict_of_arrays, (input_dim, hidden_dim, output_dim))."""
    w1, b1 = params["w1"], params["b1"]
    w2, b2 = params["w2"], params["b2"]
    w3, b3 = params["w3"], params["b3"]
    w4, b4 = params["w4"], params["b4"]

    input_dim, hidden_dim = w1.shape
    output_dim = w4.shape[1]
    in_pad = _round_up(input_dim, _LANE)
    hid_pad = _round_up(hidden_dim, _LANE)
    out_pad = _round_up(output_dim, _LANE)

    prepared = {
        "w1": _pad2(w1, in_pad, hid_pad).astype(jnp.bfloat16),
        "w2": _pad2(w2, hid_pad, hid_pad).astype(jnp.bfloat16),
        "w3": _pad2(w3, hid_pad, hid_pad).astype(jnp.bfloat16),
        "w4": _pad2(w4, hid_pad, out_pad).astype(jnp.bfloat16),
        "b1": _pad_axis(b1, 1, hid_pad).astype(jnp.float32),
        "b2": _pad_axis(b2, 1, hid_pad).astype(jnp.float32),
        "b3": _pad_axis(b3, 1, hid_pad).astype(jnp.float32),
        "b4": _pad_axis(b4, 1, out_pad).astype(jnp.float32),
    }
    prepared = jax.tree_util.tree_map(jnp.asarray, prepared)
    return prepared, (input_dim, hidden_dim, output_dim)


@functools.partial(jax.jit, static_argnames=("dims", "batch_tile", "x_buffers"))
def dqn_per_forward(x, prepared, dims, *, batch_tile=None, x_buffers=2):
    """DQNPER forward (relu(fc1..fc3) -> fc4) as one Pallas TPU kernel.

    x: [B, input_dim] float32
    prepared: dict from prepare_dqn_per_params (padded bf16 weights, f32 biases)
    dims: static (input_dim, hidden_dim, output_dim)
    """
    input_dim, hidden_dim, output_dim = dims
    B, x_in = x.shape
    assert x_in == input_dim, (x_in, input_dim)

    in_pad, hid_pad = prepared["w1"].shape
    out_pad = prepared["w4"].shape[1]

    vmem_cap, num_tc = _tpu_generation_info()
    vmem_limit = _vmem_limit_bytes(vmem_cap)

    if batch_tile is None:
        batch_tile = _pick_batch_tile(B, num_tc)
    assert batch_tile % _SUBLANE_BF16 == 0, "batch_tile must be a multiple of 16"

    # --- VMEM budget check for the resident-weights layout ------------------------
    weight_bytes = 2 * (in_pad * hid_pad + 2 * hid_pad * hid_pad + hid_pad * out_pad)
    bias_bytes = 4 * (3 * hid_pad + out_pad)

    def tile_bytes(bt):
        return (x_buffers * bt * in_pad * 2      # x pipeline buffers (bf16)
                + 2 * bt * out_pad * 4           # double-buffered output (f32)
                + 3 * bt * hid_pad * 4)          # f32 intermediates / regalloc headroom

    budget = int(vmem_limit * 0.9)
    if weight_bytes + bias_bytes + tile_bytes(_SUBLANE_BF16) > budget:
        # TODO(synk): for hidden_dim >= ~3-4k, tile the hidden/K dim with a grid
        # reduction axis + f32 VMEM accumulator instead of resident weights.
        raise ValueError("resident-weight layout does not fit VMEM; hidden_dim too large")
    while batch_tile > _SUBLANE_BF16 and (
            weight_bytes + bias_bytes + tile_bytes(batch_tile) > budget):
        batch_tile = _round_up(batch_tile // 2, _SUBLANE_BF16)

    B_pad = _round_up(B, batch_tile)
    grid = (B_pad // batch_tile,)

    # --- input: cast to bf16, lane-pad feature dim, zero-pad batch -----------------
    x_bf = _pad_axis(_pad_axis(x.astype(jnp.bfloat16), 1, in_pad), 0, B_pad)

    # Grid-invariant weights/biases: full-extent blocks, single-buffered.
    def const_spec(shape):
        return pl.BlockSpec(shape, lambda i: (0,) * len(shape),
                            pipeline_mode=pl.Buffered(1))

    x_spec_kwargs = {} if x_buffers == 2 else {"pipeline_mode": pl.Buffered(x_buffers)}
    x_spec = pl.BlockSpec((batch_tile, in_pad), lambda i: (i, 0), **x_spec_kwargs)

    # Cost estimate from the real (unpadded) problem size.
    real_weight_elems = (input_dim * hidden_dim + 2 * hidden_dim * hidden_dim
                         + hidden_dim * output_dim)
    flops = 2 * B * real_weight_elems
    bytes_accessed = (2 * B * input_dim                       # x (bf16)
                      + 2 * real_weight_elems                 # weights (bf16)
                      + 4 * (3 * hidden_dim + output_dim)     # biases (f32)
                      + 4 * B * output_dim)                   # output (f32)

    out_padded = pl.pallas_call(
        _dqn_kernel,
        out_shape=jax.ShapeDtypeStruct((B_pad, out_pad), jnp.float32),
        grid_spec=pltpu.PrefetchScalarGridSpec(
            num_scalar_prefetch=0,
            grid=grid,
            in_specs=[
                x_spec,
                const_spec(prepared["w1"].shape), const_spec(prepared["b1"].shape),
                const_spec(prepared["w2"].shape), const_spec(prepared["b2"].shape),
                const_spec(prepared["w3"].shape), const_spec(prepared["b3"].shape),
                const_spec(prepared["w4"].shape), const_spec(prepared["b4"].shape),
            ],
            out_specs=pl.BlockSpec((batch_tile, out_pad), lambda i: (i, 0)),
        ),
        compiler_params=pltpu.CompilerParams(
            dimension_semantics=("parallel",),
            vmem_limit_bytes=vmem_limit,
        ),
        cost_estimate=pl.CostEstimate(
            flops=flops, transcendentals=0, bytes_accessed=bytes_accessed),
    )(x_bf, prepared["w1"], prepared["b1"], prepared["w2"], prepared["b2"],
      prepared["w3"], prepared["b3"], prepared["w4"], prepared["b4"])

    # Slice off the zero-padded batch rows and lane-padded action columns.
    return out_padded[:B, :output_dim]


def init_dqn_per_params(key, input_dim, output_dim, hidden_dim):
    """Deterministic synthetic init mirroring nn.Linear shapes (weights stored [in, out])."""
    dims = [(input_dim, hidden_dim), (hidden_dim, hidden_dim),
            (hidden_dim, hidden_dim), (hidden_dim, output_dim)]
    params = {}
    keys = jax.random.split(key, 2 * len(dims))
    for idx, (fan_in, fan_out) in enumerate(dims):
        bound = 1.0 / jnp.sqrt(jnp.float32(fan_in))  # PyTorch nn.Linear-style uniform bound
        w = jax.random.uniform(keys[2 * idx], (fan_in, fan_out),
                               jnp.float32, -bound, bound)
        b = jax.random.uniform(keys[2 * idx + 1], (1, fan_out),
                               jnp.float32, -bound, bound)
        params[f"w{idx + 1}"] = w
        params[f"b{idx + 1}"] = b
    return params


def dqn_per_reference(x, params):
    h = x
    for i in range(1, 4):
        h = jnp.maximum(h @ params[f"w{i}"] + params[f"b{i}"], 0.0)
    return h @ params["w4"] + params["b4"]


if __name__ == "__main__":
    key = jax.random.PRNGKey(0)
    k_x, k_p = jax.random.split(key)

    batch, input_dim, hidden_dim, output_dim = 8, 16, 32, 4
    x = jax.random.normal(k_x, (batch, input_dim), jnp.float32)
    params = init_dqn_per_params(k_p, input_dim, output_dim, hidden_dim)

    # Pad/cast weights once (outside the per-call forward).
    prepared, dims = prepare_dqn_per_params(params)

    out = dqn_per_forward(x, prepared, dims=dims)
    out = jax.block_until_ready(out)

    ref = dqn_per_reference(x, params)
    assert out.shape == (batch, output_dim)
    # bf16 matmul operands with f32 accumulation -> ~1e-2 relative tolerance vs f32 ref.
    assert jnp.allclose(out, ref, atol=5e-2, rtol=5e-2), float(jnp.max(jnp.abs(out - ref)))

    print("KERNEL_OK")
</pallas_src>

<mosaic_0001>
module attributes {stable_mosaic.version = 11 : i64} {
  func.func @_dqn_kernel(%arg0: i32, %arg1: memref<16x128xbf16, #tpu.memory_space<vmem>>, %arg2: memref<128x128xbf16, #tpu.memory_space<vmem>>, %arg3: memref<1x128xf32, #tpu.memory_space<vmem>>, %arg4: memref<128x128xbf16, #tpu.memory_space<vmem>>, %arg5: memref<1x128xf32, #tpu.memory_space<vmem>>, %arg6: memref<128x128xbf16, #tpu.memory_space<vmem>>, %arg7: memref<1x128xf32, #tpu.memory_space<vmem>>, %arg8: memref<128x128xbf16, #tpu.memory_space<vmem>>, %arg9: memref<1x128xf32, #tpu.memory_space<vmem>>, %arg10: memref<16x128xf32, #tpu.memory_space<vmem>>) attributes {dimension_semantics = [#tpu.dimension_semantics<parallel>], iteration_bounds = array<i64: 1>, scalar_prefetch = 0 : i64, scratch_operands = 0 : i64, tpu.core_type = #tpu.core_type<tc>, window_params = [{transform_indices = @transform_0, window_bounds = array<i64: 16, 128>}, {pipeline_mode = #tpu.pipeline_mode<synchronous>, transform_indices = @transform_1, window_bounds = array<i64: 128, 128>}, {pipeline_mode = #tpu.pipeline_mode<synchronous>, transform_indices = @transform_2, window_bounds = array<i64: 1, 128>}, {pipeline_mode = #tpu.pipeline_mode<synchronous>, transform_indices = @transform_3, window_bounds = array<i64: 128, 128>}, {pipeline_mode = #tpu.pipeline_mode<synchronous>, transform_indices = @transform_4, window_bounds = array<i64: 1, 128>}, {pipeline_mode = #tpu.pipeline_mode<synchronous>, transform_indices = @transform_5, window_bounds = array<i64: 128, 128>}, {pipeline_mode = #tpu.pipeline_mode<synchronous>, transform_indices = @transform_6, window_bounds = array<i64: 1, 128>}, {pipeline_mode = #tpu.pipeline_mode<synchronous>, transform_indices = @transform_7, window_bounds = array<i64: 128, 128>}, {pipeline_mode = #tpu.pipeline_mode<synchronous>, transform_indices = @transform_8, window_bounds = array<i64: 1, 128>}, {transform_indices = @transform_9, window_bounds = array<i64: 16, 128>}]} {
    %c0 = arith.constant 0 : index
    %c0_0 = arith.constant 0 : index
    %0 = vector.load %arg1[%c0, %c0_0] : memref<16x128xbf16, #tpu.memory_space<vmem>>, vector<16x128xbf16>
    %c0_1 = arith.constant 0 : index
    %c0_2 = arith.constant 0 : index
    %1 = vector.load %arg2[%c0_1, %c0_2] : memref<128x128xbf16, #tpu.memory_space<vmem>>, vector<128x128xbf16>
    %cst = arith.constant dense<0.000000e+00> : vector<16x128xf32>
    %2 = tpu.matmul %0, %1, %cst {dimension_numbers = #tpu.dot_dimension_numbers<[1], [0], [0], [1], [0, 0, 1, 1], [], []>} : vector<16x128xbf16>, vector<128x128xbf16>, vector<16x128xf32> -> vector<16x128xf32>
    %c0_3 = arith.constant 0 : index
    %c0_4 = arith.constant 0 : index
    %3 = vector.load %arg3[%c0_3, %c0_4] : memref<1x128xf32, #tpu.memory_space<vmem>>, vector<1x128xf32>
    %4 = vector.broadcast %3 : vector<1x128xf32> to vector<16x128xf32>
    %5 = arith.addf %2, %4 : vector<16x128xf32>
    %cst_5 = arith.constant 0.000000e+00 : f32
    %6 = vector.broadcast %cst_5 : f32 to vector<16x128xf32>
    %7 = arith.maximumf %5, %6 : vector<16x128xf32>
    %8 = arith.truncf %7 : vector<16x128xf32> to vector<16x128xbf16>
    %c0_6 = arith.constant 0 : index
    %c0_7 = arith.constant 0 : index
    %9 = vector.load %arg4[%c0_6, %c0_7] : memref<128x128xbf16, #tpu.memory_space<vmem>>, vector<128x128xbf16>
    %cst_8 = arith.constant dense<0.000000e+00> : vector<16x128xf32>
    %10 = tpu.matmul %8, %9, %cst_8 {dimension_numbers = #tpu.dot_dimension_numbers<[1], [0], [0], [1], [0, 0, 1, 1], [], []>} : vector<16x128xbf16>, vector<128x128xbf16>, vector<16x128xf32> -> vector<16x128xf32>
    %c0_9 = arith.constant 0 : index
    %c0_10 = arith.constant 0 : index
    %11 = vector.load %arg5[%c0_9, %c0_10] : memref<1x128xf32, #tpu.memory_space<vmem>>, vector<1x128xf32>
    %12 = vector.broadcast %11 : vector<1x128xf32> to vector<16x128xf32>
    %13 = arith.addf %10, %12 : vector<16x128xf32>
    %cst_11 = arith.constant 0.000000e+00 : f32
    %14 = vector.broadcast %cst_11 : f32 to vector<16x128xf32>
    %15 = arith.maximumf %13, %14 : vector<16x128xf32>
    %16 = arith.truncf %15 : vector<16x128xf32> to vector<16x128xbf16>
    %c0_12 = arith.constant 0 : index
    %c0_13 = arith.constant 0 : index
    %17 = vector.load %arg6[%c0_12, %c0_13] : memref<128x128xbf16, #tpu.memory_space<vmem>>, vector<128x128xbf16>
    %cst_14 = arith.constant dense<0.000000e+00> : vector<16x128xf32>
    %18 = tpu.matmul %16, %17, %cst_14 {dimension_numbers = #tpu.dot_dimension_numbers<[1], [0], [0], [1], [0, 0, 1, 1], [], []>} : vector<16x128xbf16>, vector<128x128xbf16>, vector<16x128xf32> -> vector<16x128xf32>
    %c0_15 = arith.constant 0 : index
    %c0_16 = arith.constant 0 : index
    %19 = vector.load %arg7[%c0_15, %c0_16] : memref<1x128xf32, #tpu.memory_space<vmem>>, vector<1x128xf32>
    %20 = vector.broadcast %19 : vector<1x128xf32> to vector<16x128xf32>
    %21 = arith.addf %18, %20 : vector<16x128xf32>
    %cst_17 = arith.constant 0.000000e+00 : f32
    %22 = vector.broadcast %cst_17 : f32 to vector<16x128xf32>
    %23 = arith.maximumf %21, %22 : vector<16x128xf32>
    %24 = arith.truncf %23 : vector<16x128xf32> to vector<16x128xbf16>
    %c0_18 = arith.constant 0 : index
    %c0_19 = arith.constant 0 : index
    %25 = vector.load %arg8[%c0_18, %c0_19] : memref<128x128xbf16, #tpu.memory_space<vmem>>, vector<128x128xbf16>
    %cst_20 = arith.constant dense<0.000000e+00> : vector<16x128xf32>
    %26 = tpu.matmul %24, %25, %cst_20 {dimension_numbers = #tpu.dot_dimension_numbers<[1], [0], [0], [1], [0, 0, 1, 1], [], []>} : vector<16x128xbf16>, vector<128x128xbf16>, vector<16x128xf32> -> vector<16x128xf32>
    %c0_21 = arith.constant 0 : index
    %c0_22 = arith.constant 0 : index
    %27 = vector.load %arg9[%c0_21, %c0_22] : memref<1x128xf32, #tpu.memory_space<vmem>>, vector<1x128xf32>
    %28 = vector.broadcast %27 : vector<1x128xf32> to vector<16x128xf32>
    %29 = arith.addf %26, %28 : vector<16x128xf32>
    %c0_23 = arith.constant 0 : index
    %c0_24 = arith.constant 0 : index
    %30 = vector.load %arg10[%c0_23, %c0_24] : memref<16x128xf32, #tpu.memory_space<vmem>>, vector<16x128xf32>
    tpu.vector_store %arg10[%c0_23, %c0_24], %29 {strides = array<i32>} : memref<16x128xf32, #tpu.memory_space<vmem>>, vector<16x128xf32>,
    return
  }
  func.func @transform_0(%arg0: i32) -> (i32, i32) {
    %c0_i32 = arith.constant 0 : i32
    %c0_i32_0 = arith.constant 0 : i32
    return %arg0, %c0_i32 : i32, i32
  }
  func.func @transform_1(%arg0: i32) -> (i32, i32) {
    %c0_i32 = arith.constant 0 : i32
    %c0_i32_0 = arith.constant 0 : i32
    %c0_i32_1 = arith.constant 0 : i32
    return %c0_i32, %c0_i32_0 : i32, i32
  }
  func.func @transform_2(%arg0: i32) -> (i32, i32) {
    %c0_i32 = arith.constant 0 : i32
    %c0_i32_0 = arith.constant 0 : i32
    %c0_i32_1 = arith.constant 0 : i32
    return %c0_i32, %c0_i32_0 : i32, i32
  }
  func.func @transform_3(%arg0: i32) -> (i32, i32) {
    %c0_i32 = arith.constant 0 : i32
    %c0_i32_0 = arith.constant 0 : i32
    %c0_i32_1 = arith.constant 0 : i32
    return %c0_i32, %c0_i32_0 : i32, i32
  }
  func.func @transform_4(%arg0: i32) -> (i32, i32) {
    %c0_i32 = arith.constant 0 : i32
    %c0_i32_0 = arith.constant 0 : i32
    %c0_i32_1 = arith.constant 0 : i32
    return %c0_i32, %c0_i32_0 : i32, i32
  }
  func.func @transform_5(%arg0: i32) -> (i32, i32) {
    %c0_i32 = arith.constant 0 : i32
    %c0_i32_0 = arith.constant 0 : i32
    %c0_i32_1 = arith.constant 0 : i32
    return %c0_i32, %c0_i32_0 : i32, i32
  }
  func.func @transform_6(%arg0: i32) -> (i32, i32) {
    %c0_i32 = arith.constant 0 : i32
    %c0_i32_0 = arith.constant 0 : i32
    %c0_i32_1 = arith.constant 0 : i32
    return %c0_i32, %c0_i32_0 : i32, i32
  }
  func.func @transform_7(%arg0: i32) -> (i32, i32) {
    %c0_i32 = arith.constant 0 : i32
    %c0_i32_0 = arith.constant 0 : i32
    %c0_i32_1 = arith.constant 0 : i32
    return %c0_i32, %c0_i32_0 : i32, i32
  }
  func.func @transform_8(%arg0: i32) -> (i32, i32) {
    %c0_i32 = arith.constant 0 : i32
    %c0_i32_0 = arith.constant 0 : i32
    %c0_i32_1 = arith.constant 0 : i32
    return %c0_i32, %c0_i32_0 : i32, i32
  }
  func.func @transform_9(%arg0: i32) -> (i32, i32) {
    %c0_i32 = arith.constant 0 : i32
    %c0_i32_0 = arith.constant 0 : i32
    return %arg0, %c0_i32 : i32, i32
  }
}

</mosaic_0001>

<llo_original>
// kernel: dqn_per_forward.1
$region0: #{dqn_per_forward.1}
  #allocation0 [shape = 'u32[]', space=smem, size = 0x4, offset = 0x4, fixed_abs, tag = 'smem constant byte address 0x4 - core index']
  #allocation1 [shape = 'u32[144,128]{1,0:T(1,128)}', space=vmem, size = 0x12000, scoped, tag = 'internal scratch']
  %s0 = inlined_call_operand.vmem [shape: bf16[16,128], index: 0, kind: input, shape index: {}]
  %s1 = inlined_call_operand.hbm [shape: bf16[128,128], index: 1, kind: input, shape index: {}]
  %s2 = inlined_call_operand.vmem [shape: f32[1,128], index: 2, kind: input, shape index: {}]
  %s3 = inlined_call_operand.hbm [shape: bf16[128,128], index: 3, kind: input, shape index: {}]
  %s4 = inlined_call_operand.vmem [shape: f32[1,128], index: 4, kind: input, shape index: {}]
  %s5 = inlined_call_operand.hbm [shape: bf16[128,128], index: 5, kind: input, shape index: {}]
  %s6 = inlined_call_operand.vmem [shape: f32[1,128], index: 6, kind: input, shape index: {}]
  %s7 = inlined_call_operand.hbm [shape: bf16[128,128], index: 7, kind: input, shape index: {}]
  %s8 = inlined_call_operand.vmem [shape: f32[1,128], index: 8, kind: input, shape index: {}]
  %s9 = inlined_call_operand.vmem [shape: f32[16,128], index: 9, kind: output, shape index: {}]
  %s10 = sld [smem:[#allocation0]]
  $region62: #{dqn_per_forward.1} parent=0
    _
  %s12 = ssub.s32 1, %s10
  %s13 = scalar_select 0, %s12, %s10
  $region1: #{dqn_per_forward.1} parent=0
    #allocation2 [shape = 'u8[32768]{0}', space=vmem, size = 0x8000, scoped, tag = 'input window, operand 1, single buffered']
    #allocation3 [shape = 's32[1]{0}', space=sflag, size = 0x4, scoped, tag = 'scoped memory for dqn_per_forward.1']
    #allocation4 [shape = 'u8[32768]{0}', space=vmem, size = 0x8000, scoped, tag = 'input window, operand 3, single buffered']
    #allocation5 [shape = 's32[1]{0}', space=sflag, size = 0x4, scoped, tag = 'scoped memory for dqn_per_forward.1']
    #allocation6 [shape = 'u8[32768]{0}', space=vmem, size = 0x8000, scoped, tag = 'input window, operand 5, single buffered']
    #allocation7 [shape = 'u8[32768]{0}', space=vmem, size = 0x8000, scoped, tag = 'input window, operand 7, single buffered']
    #allocation8 [shape = 's32[1]{0}', space=sflag, size = 0x4, scoped, tag = 'scoped memory for dqn_per_forward.1']
    %14 = vsyncpa [#allocation3], 0
    %15 = vsyncpa [#allocation5], 0
    %16 = vsyncpa [#allocation8], 0
    // Predicated region
    $region2: #{dqn_per_forward.1} parent=1 // pred_check
      _
    $region3: #{dqn_per_forward.1} parent=1 // pred_check_branch
      %18 = sbr.rel (0) target = $region5
    $region4: #{dqn_per_forward.1} parent=1 // pred_region
      _
    $region5: #{dqn_per_forward.1} parent=1 // pred_fallthru
      _
    // Predicated region
    $region6: #{dqn_per_forward.1} parent=1 // pred_check
      _
    $region7: #{dqn_per_forward.1} parent=1 // pred_check_branch
      %20 = sbr.rel (0) target = $region9
    $region8: #{dqn_per_forward.1} parent=1 // pred_region
      %s22 = ssub.s32 1024, 1024
      %23 = vsyncadd [#allocation3], %s22
      %s24 = sshll.u32 [#allocation2], 4
      %s25 = int_to_ptr.vmem [resolvable:$true] %s24
      %30 = dma.hbm_to_vmem [thread:$0]  %s1, 1024, %s25, [#allocation3], 64, 64, 4
    $region9: #{dqn_per_forward.1} parent=1 // pred_fallthru
      _
    // Predicated region
    $region10: #{dqn_per_forward.1} parent=1 // pred_check
      _
    $region11: #{dqn_per_forward.1} parent=1 // pred_check_branch
      %32 = sbr.rel (0) target = $region13
    $region12: #{dqn_per_forward.1} parent=1 // pred_region
      _
    $region13: #{dqn_per_forward.1} parent=1 // pred_fallthru
      _
    // Predicated region
    $region14: #{dqn_per_forward.1} parent=1 // pred_check
      _
    $region15: #{dqn_per_forward.1} parent=1 // pred_check_branch
      %34 = sbr.rel (0) target = $region17
    $region16: #{dqn_per_forward.1} parent=1 // pred_region
      %s36 = ssub.s32 1024, 1024
      %37 = vsyncadd [#allocation5], %s36
      %s38 = sshll.u32 [#allocation4], 4
      %s39 = int_to_ptr.vmem [resolvable:$true] %s38
      %44 = dma.hbm_to_vmem [thread:$0]  %s3, 1024, %s39, [#allocation5], 64, 64, 4
    $region17: #{dqn_per_forward.1} parent=1 // pred_fallthru
      _
    // Predicated region
    $region18: #{dqn_per_forward.1} parent=1 // pred_check
      _
    $region19: #{dqn_per_forward.1} parent=1 // pred_check_branch
      %46 = sbr.rel (0) target = $region21
    $region20: #{dqn_per_forward.1} parent=1 // pred_region
      _
    $region21: #{dqn_per_forward.1} parent=1 // pred_fallthru
      _
    // Predicated region
    $region22: #{dqn_per_forward.1} parent=1 // pred_check
      _
    $region23: #{dqn_per_forward.1} parent=1 // pred_check_branch
      %48 = sbr.rel (0) target = $region25
    $region24: #{dqn_per_forward.1} parent=1 // pred_region
      %s50 = ssub.s32 1024, 1024
      %51 = vsyncadd [#allocation5], %s50
      %s52 = sshll.u32 [#allocation6], 4
      %s53 = int_to_ptr.vmem [resolvable:$true] %s52
      %58 = dma.hbm_to_vmem [thread:$0]  %s5, 1024, %s53, [#allocation5], 64, 64, 4
    $region25: #{dqn_per_forward.1} parent=1 // pred_fallthru
      _
    // Predicated region
    $region26: #{dqn_per_forward.1} parent=1 // pred_check
      _
    $region27: #{dqn_per_forward.1} parent=1 // pred_check_branch
      %60 = sbr.rel (0) target = $region29
    $region28: #{dqn_per_forward.1} parent=1 // pred_region
      _
    $region29: #{dqn_per_forward.1} parent=1 // pred_fallthru
      _
    // Predicated region
    $region30: #{dqn_per_forward.1} parent=1 // pred_check
      _
    $region31: #{dqn_per_forward.1} parent=1 // pred_check_branch
      %62 = sbr.rel (0) target = $region33
    $region32: #{dqn_per_forward.1} parent=1 // pred_region
      %s64 = ssub.s32 1024, 1024
      %65 = vsyncadd [#allocation8], %s64
      %s66 = sshll.u32 [#allocation7], 4
      %s67 = int_to_ptr.vmem [resolvable:$true] %s66
      %72 = dma.hbm_to_vmem [thread:$0]  %s7, 1024, %s67, [#allocation8], 64, 64, 4
    $region33: #{dqn_per_forward.1} parent=1 // pred_fallthru
      _
    // Predicated region
    $region34: #{dqn_per_forward.1} parent=1 // pred_check
      _
    $region35: #{dqn_per_forward.1} parent=1 // pred_check_branch
      %74 = sbr.rel (0) target = $region37
    $region36: #{dqn_per_forward.1} parent=1 // pred_region
      _
    $region37: #{dqn_per_forward.1} parent=1 // pred_fallthru
      _
    // Predicated region
    $region38: #{dqn_per_forward.1} parent=1 // pred_check
      _
    $region39: #{dqn_per_forward.1} parent=1 // pred_check_branch
      %76 = sbr.rel (0) target = $region41
    $region40: #{dqn_per_forward.1} parent=1 // pred_region
      %77 = dma.done [#allocation3], 1024
    $region41: #{dqn_per_forward.1} parent=1 // pred_fallthru
      _
    // Predicated region
    $region42: #{dqn_per_forward.1} parent=1 // pred_check
      _
    $region43: #{dqn_per_forward.1} parent=1 // pred_check_branch
      %79 = sbr.rel (0) target = $region45
    $region44: #{dqn_per_forward.1} parent=1 // pred_region
      %80 = dma.done [#allocation5], 1024
    $region45: #{dqn_per_forward.1} parent=1 // pred_fallthru
      _
    // Predicated region
    $region46: #{dqn_per_forward.1} parent=1 // pred_check
      _
    $region47: #{dqn_per_forward.1} parent=1 // pred_check_branch
      %82 = sbr.rel (0) target = $region49
    $region48: #{dqn_per_forward.1} parent=1 // pred_region
      %83 = dma.done [#allocation5], 1024
    $region49: #{dqn_per_forward.1} parent=1 // pred_fallthru
      _
    // Predicated region
    $region50: #{dqn_per_forward.1} parent=1 // pred_check
      _
    $region51: #{dqn_per_forward.1} parent=1 // pred_check_branch
      %85 = sbr.rel (0) target = $region53
    $region52: #{dqn_per_forward.1} parent=1 // pred_region
      %86 = dma.done [#allocation8], 1024
    $region53: #{dqn_per_forward.1} parent=1 // pred_fallthru
      _
    %v88 = vld [vmem:[%s0] sm:$0xf]
    %v89 = vld [vmem:[%s0 + $0x4] sm:$0xf]
    %v90 = vld [vmem:[#allocation2] sm:$0xf]
    %v91 = vld [vmem:[#allocation2 + $0x4] sm:$0xf]
    %v92 = vld [vmem:[#allocation2 + $0x8] sm:$0xf]
    %v93 = vld [vmem:[#allocation2 + $0xc] sm:$0xf]
    %v94 = vld [vmem:[#allocation2 + $0x10] sm:$0xf]
    %v95 = vld [vmem:[#allocation2 + $0x14] sm:$0xf]
    %v96 = vld [vmem:[#allocation2 + $0x18] sm:$0xf]
    %v97 = vld [vmem:[#allocation2 + $0x1c] sm:$0xf]
    %v98 = vld [vmem:[#allocation2 + $0x20] sm:$0xf]
    %v99 = vld [vmem:[#allocation2 + $0x24] sm:$0xf]
    %v100 = vld [vmem:[#allocation2 + $0x28] sm:$0xf]
    %v101 = vld [vmem:[#allocation2 + $0x2c] sm:$0xf]
    %v102 = vld [vmem:[#allocation2 + $0x30] sm:$0xf]
    %v103 = vld [vmem:[#allocation2 + $0x34] sm:$0xf]
    %v104 = vld [vmem:[#allocation2 + $0x38] sm:$0xf]
    %v105 = vld [vmem:[#allocation2 + $0x3c] sm:$0xf]
    %v106 = vld [vmem:[%s2] sm:$0x1]
    %v108 = vlaneseq
    %v109 = vshrl.u32 %v108, 7
    %v110 = vsub.s32 0, %v109
    %v111 = vrot.slane %v106, %v110
    %v115 = vunpack.c.l.b16 %v88
    %v116 = vunpack.c.l.b16 %v89
    %v117 = vpack.c.b16 %v116, %v115
    %v135 = vunpack.c.l.b16 %v90
    %v136 = vunpack.c.l.b16 %v91
    %v137 = vunpack.c.l.b16 %v92
    %v138 = vunpack.c.l.b16 %v93
    %v139 = vunpack.c.l.b16 %v94
    %v140 = vunpack.c.l.b16 %v95
    %v141 = vunpack.c.l.b16 %v96
    %v142 = vunpack.c.l.b16 %v97
    %v143 = vunpack.c.l.b16 %v98
    %v144 = vunpack.c.l.b16 %v99
    %v145 = vunpack.c.l.b16 %v100
    %v146 = vunpack.c.l.b16 %v101
    %v147 = vunpack.c.l.b16 %v102
    %v148 = vunpack.c.l.b16 %v103
    %v149 = vunpack.c.l.b16 %v104
    %v150 = vunpack.c.l.b16 %v105
    %v151 = vpack.c.b16 %v136, %v135
    %v152 = vpack.c.b16 %v138, %v137
    %v153 = vpack.c.b16 %v140, %v139
    %v154 = vpack.c.b16 %v142, %v141
    %v155 = vpack.c.b16 %v144, %v143
    %v156 = vpack.c.b16 %v146, %v145
    %v157 = vpack.c.b16 %v148, %v147
    %v158 = vpack.c.b16 %v150, %v149
    %167 = vmatprep.subr.bf16.mxu0 0
    %168 = vmatpush1.bf16.msra.mxu0 %v158
    %169 = vmatprep.subr.bf16.mxu0 0
    %170 = vmatpush1.bf16.msra.mxu0 %v157
    %171 = vmatprep.subr.bf16.mxu0 0
    %172 = vmatpush1.bf16.msra.mxu0 %v156
    %173 = vmatprep.subr.bf16.mxu0 0
    %174 = vmatpush1.bf16.msra.mxu0 %v155
    %175 = vmatprep.subr.bf16.mxu0 0
    %176 = vmatpush1.bf16.msra.mxu0 %v154
    %177 = vmatprep.subr.bf16.mxu0 0
    %178 = vmatpush1.bf16.msra.mxu0 %v153
    %179 = vmatprep.subr.bf16.mxu0 0
    %180 = vmatpush1.bf16.msra.mxu0 %v152
    %181 = vmatprep.subr.bf16.mxu0 0
    %182 = vmatpush1.bf16.msra.mxu0 %v151
    %183 = vmatprep.subr.bf16.mxu0 0
    %184 = vmatpush2.bf16.msra.mxu0 0
    %185 = vmatprep.subr.bf16.mxu0 0
    %186 = vmatpush2.bf16.msra.mxu0 0
    %187 = vmatprep.subr.bf16.mxu0 0
    %188 = vmatpush2.bf16.msra.mxu0 0
    %189 = vmatprep.subr.bf16.mxu0 0
    %190 = vmatpush2.bf16.msra.mxu0 0
    %191 = vmatprep.subr.bf16.mxu0 0
    %192 = vmatpush2.bf16.msra.mxu0 0
    %193 = vmatprep.subr.bf16.mxu0 0
    %194 = vmatpush2.bf16.msra.mxu0 0
    %195 = vmatprep.subr.bf16.mxu0 0
    %196 = vmatpush2.bf16.msra.mxu0 0
    %197 = vmatprep.subr.bf16.mxu0 0
    %198 = vmatpush2.bf16.msra.mxu0 0
    %199 = vmatprep.mubr.bf16.mxu0 0
    %200 = vmatmul.mubr.bf16.gmra.mxu0 %v117
    %v201 = vpop.f32.mrf.mxu0
    %v202 = vadd.f32 %v111, %v201
    %v203 = vpop.f32.mrf.mxu0
    %v204 = vpop.f32.mrf.mxu0
    %v205 = vadd.f32 %v111, %v204
    %v206 = vpop.f32.mrf.mxu0
    %207 = vdwg.mxu0
    %v208 = vmax.f32 %v202, 0.0
    %v209 = vmax.f32 %v205, 0.0
    %v210 = vpack.c.bf16 %v209, %v208
    %v211 = vld [vmem:[#allocation4] sm:$0xf]
    %v212 = vld [vmem:[#allocation4 + $0x4] sm:$0xf]
    %v213 = vld [vmem:[#allocation4 + $0x8] sm:$0xf]
    %v214 = vld [vmem:[#allocation4 + $0xc] sm:$0xf]
    %v215 = vld [vmem:[#allocation4 + $0x10] sm:$0xf]
    %v216 = vld [vmem:[#allocation4 + $0x14] sm:$0xf]
    %v217 = vld [vmem:[#allocation4 + $0x18] sm:$0xf]
    %v218 = vld [vmem:[#allocation4 + $0x1c] sm:$0xf]
    %v219 = vld [vmem:[#allocation4 + $0x20] sm:$0xf]
    %v220 = vld [vmem:[#allocation4 + $0x24] sm:$0xf]
    %v221 = vld [vmem:[#allocation4 + $0x28] sm:$0xf]
    %v222 = vld [vmem:[#allocation4 + $0x2c] sm:$0xf]
    %v223 = vld [vmem:[#allocation4 + $0x30] sm:$0xf]
    %v224 = vld [vmem:[#allocation4 + $0x34] sm:$0xf]
    %v225 = vld [vmem:[#allocation4 + $0x38] sm:$0xf]
    %v226 = vld [vmem:[#allocation4 + $0x3c] sm:$0xf]
    %v227 = vld [vmem:[%s4] sm:$0x1]
    %v229 = vlaneseq
    %v230 = vshrl.u32 %v229, 7
    %v231 = vsub.s32 0, %v230
    %v232 = vrot.slane %v227, %v231
    %v250 = vunpack.c.l.b16 %v211
    %v251 = vunpack.c.l.b16 %v212
    %v252 = vunpack.c.l.b16 %v213
    %v253 = vunpack.c.l.b16 %v214
    %v254 = vunpack.c.l.b16 %v215
    %v255 = vunpack.c.l.b16 %v216
    %v256 = vunpack.c.l.b16 %v217
    %v257 = vunpack.c.l.b16 %v218
    %v258 = vunpack.c.l.b16 %v219
    %v259 = vunpack.c.l.b16 %v220
    %v260 = vunpack.c.l.b16 %v221
    %v261 = vunpack.c.l.b16 %v222
    %v262 = vunpack.c.l.b16 %v223
    %v263 = vunpack.c.l.b16 %v224
    %v264 = vunpack.c.l.b16 %v225
    %v265 = vunpack.c.l.b16 %v226
    %v266 = vpack.c.b16 %v251, %v250
    %v267 = vpack.c.b16 %v253, %v252
    %v268 = vpack.c.b16 %v255, %v254
    %v269 = vpack.c.b16 %v257, %v256
    %v270 = vpack.c.b16 %v259, %v258
    %v271 = vpack.c.b16 %v261, %v260
    %v272 = vpack.c.b16 %v263, %v262
    %v273 = vpack.c.b16 %v265, %v264
    %282 = vmatprep.subr.bf16.mxu0 0
    %283 = vmatpush1.bf16.msra.mxu0 %v273
    %284 = vmatprep.subr.bf16.mxu0 0
    %285 = vmatpush1.bf16.msra.mxu0 %v272
    %286 = vmatprep.subr.bf16.mxu0 0
    %287 = vmatpush1.bf16.msra.mxu0 %v271
    %288 = vmatprep.subr.bf16.mxu0 0
    %289 = vmatpush1.bf16.msra.mxu0 %v270
    %290 = vmatprep.subr.bf16.mxu0 0
    %291 = vmatpush1.bf16.msra.mxu0 %v269
    %292 = vmatprep.subr.bf16.mxu0 0
    %293 = vmatpush1.bf16.msra.mxu0 %v268
    %294 = vmatprep.subr.bf16.mxu0 0
    %295 = vmatpush1.bf16.msra.mxu0 %v267
    %296 = vmatprep.subr.bf16.mxu0 0
    %297 = vmatpush1.bf16.msra.mxu0 %v266
    %298 = vmatprep.subr.bf16.mxu0 0
    %299 = vmatpush2.bf16.msra.mxu0 0
    %300 = vmatprep.subr.bf16.mxu0 0
    %301 = vmatpush2.bf16.msra.mxu0 0
    %302 = vmatprep.subr.bf16.mxu0 0
    %303 = vmatpush2.bf16.msra.mxu0 0
    %304 = vmatprep.subr.bf16.mxu0 0
    %305 = vmatpush2.bf16.msra.mxu0 0
    %306 = vmatprep.subr.bf16.mxu0 0
    %307 = vmatpush2.bf16.msra.mxu0 0
    %308 = vmatprep.subr.bf16.mxu0 0
    %309 = vmatpush2.bf16.msra.mxu0 0
    %310 = vmatprep.subr.bf16.mxu0 0
    %311 = vmatpush2.bf16.msra.mxu0 0
    %312 = vmatprep.subr.bf16.mxu0 0
    %313 = vmatpush2.bf16.msra.mxu0 0
    %314 = vmatprep.mubr.bf16.mxu0 0
    %315 = vmatmul.mubr.bf16.gmra.mxu0 %v210
    %v316 = vpop.f32.mrf.mxu0
    %v317 = vadd.f32 %v232, %v316
    %v318 = vpop.f32.mrf.mxu0
    %v319 = vpop.f32.mrf.mxu0
    %v320 = vadd.f32 %v232, %v319
    %v321 = vpop.f32.mrf.mxu0
    %322 = vdwg.mxu0
    %v323 = vmax.f32 %v317, 0.0
    %v324 = vmax.f32 %v320, 0.0
    %v325 = vpack.c.bf16 %v324, %v323
    %v326 = vld [vmem:[#allocation6] sm:$0xf]
    %v327 = vld [vmem:[#allocation6 + $0x4] sm:$0xf]
    %v328 = vld [vmem:[#allocation6 + $0x8] sm:$0xf]
    %v329 = vld [vmem:[#allocation6 + $0xc] sm:$0xf]
    %v330 = vld [vmem:[#allocation6 + $0x10] sm:$0xf]
    %v331 = vld [vmem:[#allocation6 + $0x14] sm:$0xf]
    %v332 = vld [vmem:[#allocation6 + $0x18] sm:$0xf]
    %v333 = vld [vmem:[#allocation6 + $0x1c] sm:$0xf]
    %v334 = vld [vmem:[#allocation6 + $0x20] sm:$0xf]
    %v335 = vld [vmem:[#allocation6 + $0x24] sm:$0xf]
    %v336 = vld [vmem:[#allocation6 + $0x28] sm:$0xf]
    %v337 = vld [vmem:[#allocation6 + $0x2c] sm:$0xf]
    %v338 = vld [vmem:[#allocation6 + $0x30] sm:$0xf]
    %v339 = vld [vmem:[#allocation6 + $0x34] sm:$0xf]
    %v340 = vld [vmem:[#allocation6 + $0x38] sm:$0xf]
    %v341 = vld [vmem:[#allocation6 + $0x3c] sm:$0xf]
    %v342 = vld [vmem:[%s6] sm:$0x1]
    %v344 = vlaneseq
    %v345 = vshrl.u32 %v344, 7
    %v346 = vsub.s32 0, %v345
    %v347 = vrot.slane %v342, %v346
    %v365 = vunpack.c.l.b16 %v326
    %v366 = vunpack.c.l.b16 %v327
    %v367 = vunpack.c.l.b16 %v328
    %v368 = vunpack.c.l.b16 %v329
    %v369 = vunpack.c.l.b16 %v330
    %v370 = vunpack.c.l.b16 %v331
    %v371 = vunpack.c.l.b16 %v332
    %v372 = vunpack.c.l.b16 %v333
    %v373 = vunpack.c.l.b16 %v334
    %v374 = vunpack.c.l.b16 %v335
    %v375 = vunpack.c.l.b16 %v336
    %v376 = vunpack.c.l.b16 %v337
    %v377 = vunpack.c.l.b16 %v338
    %v378 = vunpack.c.l.b16 %v339
    %v379 = vunpack.c.l.b16 %v340
    %v380 = vunpack.c.l.b16 %v341
    %v381 = vpack.c.b16 %v366, %v365
    %v382 = vpack.c.b16 %v368, %v367
    %v383 = vpack.c.b16 %v370, %v369
    %v384 = vpack.c.b16 %v372, %v371
    %v385 = vpack.c.b16 %v374, %v373
    %v386 = vpack.c.b16 %v376, %v375
    %v387 = vpack.c.b16 %v378, %v377
    %v388 = vpack.c.b16 %v380, %v379
    %397 = vmatprep.subr.bf16.mxu0 0
    %398 = vmatpush1.bf16.msra.mxu0 %v388
    %399 = vmatprep.subr.bf16.mxu0 0
    %400 = vmatpush1.bf16.msra.mxu0 %v387
    %401 = vmatprep.subr.bf16.mxu0 0
    %402 = vmatpush1.bf16.msra.mxu0 %v386
    %403 = vmatprep.subr.bf16.mxu0 0
    %404 = vmatpush1.bf16.msra.mxu0 %v385
    %405 = vmatprep.subr.bf16.mxu0 0
    %406 = vmatpush1.bf16.msra.mxu0 %v384
    %407 = vmatprep.subr.bf16.mxu0 0
    %408 = vmatpush1.bf16.msra.mxu0 %v383
    %409 = vmatprep.subr.bf16.mxu0 0
    %410 = vmatpush1.bf16.msra.mxu0 %v382
    %411 = vmatprep.subr.bf16.mxu0 0
    %412 = vmatpush1.bf16.msra.mxu0 %v381
    %413 = vmatprep.subr.bf16.mxu0 0
    %414 = vmatpush2.bf16.msra.mxu0 0
    %415 = vmatprep.subr.bf16.mxu0 0
    %416 = vmatpush2.bf16.msra.mxu0 0
    %417 = vmatprep.subr.bf16.mxu0 0
    %418 = vmatpush2.bf16.msra.mxu0 0
    %419 = vmatprep.subr.bf16.mxu0 0
    %420 = vmatpush2.bf16.msra.mxu0 0
    %421 = vmatprep.subr.bf16.mxu0 0
    %422 = vmatpush2.bf16.msra.mxu0 0
    %423 = vmatprep.subr.bf16.mxu0 0
    %424 = vmatpush2.bf16.msra.mxu0 0
    %425 = vmatprep.subr.bf16.mxu0 0
    %426 = vmatpush2.bf16.msra.mxu0 0
    %427 = vmatprep.subr.bf16.mxu0 0
    %428 = vmatpush2.bf16.msra.mxu0 0
    %429 = vmatprep.mubr.bf16.mxu0 0
    %430 = vmatmul.mubr.bf16.gmra.mxu0 %v325
    %v431 = vpop.f32.mrf.mxu0
    %v432 = vadd.f32 %v347, %v431
    %v433 = vpop.f32.mrf.mxu0
    %v434 = vpop.f32.mrf.mxu0
    %v435 = vadd.f32 %v347, %v434
    %v436 = vpop.f32.mrf.mxu0
    %437 = vdwg.mxu0
    %v438 = vmax.f32 %v432, 0.0
    %v439 = vmax.f32 %v435, 0.0
    %v440 = vpack.c.bf16 %v439, %v438
    %v441 = vld [vmem:[#allocation7] sm:$0xf]
    %v442 = vld [vmem:[#allocation7 + $0x4] sm:$0xf]
    %v443 = vld [vmem:[#allocation7 + $0x8] sm:$0xf]
    %v444 = vld [vmem:[#allocation7 + $0xc] sm:$0xf]
    %v445 = vld [vmem:[#allocation7 + $0x10] sm:$0xf]
    %v446 = vld [vmem:[#allocation7 + $0x14] sm:$0xf]
    %v447 = vld [vmem:[#allocation7 + $0x18] sm:$0xf]
    %v448 = vld [vmem:[#allocation7 + $0x1c] sm:$0xf]
    %v449 = vld [vmem:[#allocation7 + $0x20] sm:$0xf]
    %v450 = vld [vmem:[#allocation7 + $0x24] sm:$0xf]
    %v451 = vld [vmem:[#allocation7 + $0x28] sm:$0xf]
    %v452 = vld [vmem:[#allocation7 + $0x2c] sm:$0xf]
    %v453 = vld [vmem:[#allocation7 + $0x30] sm:$0xf]
    %v454 = vld [vmem:[#allocation7 + $0x34] sm:$0xf]
    %v455 = vld [vmem:[#allocation7 + $0x38] sm:$0xf]
    %v456 = vld [vmem:[#allocation7 + $0x3c] sm:$0xf]
    %v457 = vld [vmem:[%s8] sm:$0x1]
    %v459 = vlaneseq
    %v460 = vshrl.u32 %v459, 7
    %v461 = vsub.s32 0, %v460
    %v462 = vrot.slane %v457, %v461
    %v480 = vunpack.c.l.b16 %v441
    %v481 = vunpack.c.l.b16 %v442
    %v482 = vunpack.c.l.b16 %v443
    %v483 = vunpack.c.l.b16 %v444
    %v484 = vunpack.c.l.b16 %v445
    %v485 = vunpack.c.l.b16 %v446
    %v486 = vunpack.c.l.b16 %v447
    %v487 = vunpack.c.l.b16 %v448
    %v488 = vunpack.c.l.b16 %v449
    %v489 = vunpack.c.l.b16 %v450
    %v490 = vunpack.c.l.b16 %v451
    %v491 = vunpack.c.l.b16 %v452
    %v492 = vunpack.c.l.b16 %v453
    %v493 = vunpack.c.l.b16 %v454
    %v494 = vunpack.c.l.b16 %v455
    %v495 = vunpack.c.l.b16 %v456
    %v496 = vpack.c.b16 %v481, %v480
    %v497 = vpack.c.b16 %v483, %v482
    %v498 = vpack.c.b16 %v485, %v484
    %v499 = vpack.c.b16 %v487, %v486
    %v500 = vpack.c.b16 %v489, %v488
    %v501 = vpack.c.b16 %v491, %v490
    %v502 = vpack.c.b16 %v493, %v492
    %v503 = vpack.c.b16 %v495, %v494
    %512 = vmatprep.subr.bf16.mxu0 0
    %513 = vmatpush1.bf16.msra.mxu0 %v503
    %514 = vmatprep.subr.bf16.mxu0 0
    %515 = vmatpush1.bf16.msra.mxu0 %v502
    %516 = vmatprep.subr.bf16.mxu0 0
    %517 = vmatpush1.bf16.msra.mxu0 %v501
    %518 = vmatprep.subr.bf16.mxu0 0
    %519 = vmatpush1.bf16.msra.mxu0 %v500
    %520 = vmatprep.subr.bf16.mxu0 0
    %521 = vmatpush1.bf16.msra.mxu0 %v499
    %522 = vmatprep.subr.bf16.mxu0 0
    %523 = vmatpush1.bf16.msra.mxu0 %v498
    %524 = vmatprep.subr.bf16.mxu0 0
    %525 = vmatpush1.bf16.msra.mxu0 %v497
    %526 = vmatprep.subr.bf16.mxu0 0
    %527 = vmatpush1.bf16.msra.mxu0 %v496
    %528 = vmatprep.subr.bf16.mxu0 0
    %529 = vmatpush2.bf16.msra.mxu0 0
    %530 = vmatprep.subr.bf16.mxu0 0
    %531 = vmatpush2.bf16.msra.mxu0 0
    %532 = vmatprep.subr.bf16.mxu0 0
    %533 = vmatpush2.bf16.msra.mxu0 0
    %534 = vmatprep.subr.bf16.mxu0 0
    %535 = vmatpush2.bf16.msra.mxu0 0
    %536 = vmatprep.subr.bf16.mxu0 0
    %537 = vmatpush2.bf16.msra.mxu0 0
    %538 = vmatprep.subr.bf16.mxu0 0
    %539 = vmatpush2.bf16.msra.mxu0 0
    %540 = vmatprep.subr.bf16.mxu0 0
    %541 = vmatpush2.bf16.msra.mxu0 0
    %542 = vmatprep.subr.bf16.mxu0 0
    %543 = vmatpush2.bf16.msra.mxu0 0
    %544 = vmatprep.mubr.bf16.mxu0 0
    %545 = vmatmul.mubr.bf16.gmra.mxu0 %v440
    %v546 = vpop.f32.mrf.mxu0
    %v547 = vadd.f32 %v462, %v546
    %v548 = vpop.f32.mrf.mxu0
    %v549 = vpop.f32.mrf.mxu0
    %v550 = vadd.f32 %v462, %v549
    %v551 = vpop.f32.mrf.mxu0
    %552 = vdwg.mxu0
    %553 = vst [vmem:[%s9] sm:$0xff] %v547
    %554 = vst [vmem:[%s9 + $0x8] sm:$0xff] %v550
    // Predicated region
    $region54: #{dqn_per_forward.1} parent=1 // pred_check
      _
    $region55: #{dqn_per_forward.1} parent=1 // pred_check_branch
      %556 = sbr.rel (0) target = $region57
    $region56: #{dqn_per_forward.1} parent=1 // pred_region
      _
    $region57: #{dqn_per_forward.1} parent=1 // pred_fallthru
      _
    // Predicated region
    $region58: #{dqn_per_forward.1} parent=1 // pred_check
      _
    $region59: #{dqn_per_forward.1} parent=1 // pred_check_branch
      %558 = sbr.rel (0) target = $region61
    $region60: #{dqn_per_forward.1} parent=1 // pred_region
      _
    $region61: #{dqn_per_forward.1} parent=1 // pred_fallthru
      _
    %559 = vsyncpa [#allocation3], 1
    %560 = vsyncpa [#allocation5], 1
    %561 = vsyncpa [#allocation8], 1

</llo_original>
